<compile_context>
chip_gen: v6e
topology: v6e:2x2x1
jax: 0.10.0
libtpu: 0.0.40
codegen_flags: <defaults>
</compile_context>

<pallas_src>
import math
import jax
import jax.numpy as jnp
from jax.experimental import pallas as pl
from jax.experimental.pallas import tpu as pltpu


# ------------------------------ helpers ------------------------------------ #
def _round_up(v, m):
    return ((v + m - 1) // m) * m


def _pad2(a, rows, cols, dtype):
    out = jnp.zeros((rows, cols), dtype)
    return out.at[: a.shape[0], : a.shape[1]].set(a.astype(dtype))


# ----------------------------- Pallas kernels ------------------------------ #
def conv1_kernel(adj_ref, x_ref, w1_ref, b1_ref, h1_ref, acc_ref):
    # conv1 (norm='None'):  h1 = (A @ x) @ W1 + b1
    # grid = (row tiles, k tiles); aggregation accumulated over k in f32 scratch.
    k = pl.program_id(1)

    @pl.when(k == 0)
    def _():
        acc_ref[...] = jnp.zeros_like(acc_ref)

    adj = adj_ref[...].astype(jnp.bfloat16)        # int8 -> bf16 upcast on VPU
    acc_ref[...] += jnp.dot(adj, x_ref[...], preferred_element_type=jnp.float32)

    @pl.when(k == pl.num_programs(1) - 1)
    def _():
        h1 = jnp.dot(acc_ref[...].astype(jnp.bfloat16), w1_ref[...],
                     preferred_element_type=jnp.float32) + b1_ref[...]
        h1_ref[...] = h1.astype(jnp.bfloat16)      # emit bf16 directly


def conv2_lin_kernel(adj_ref, h1k_ref, h1t_ref, invdeg_ref,
                     w2_ref, b2_ref, wl1_ref, wl2_ref, bl_ref,
                     out_ref, acc_ref):
    # conv2 (norm='neighbornorm'):  h2 = (D^-1 A @ h1) @ W2 + b2
    # then lin(cat([h1, h2], -1)) == h1 @ Wl1 + h2 @ Wl2, followed by relu.
    k = pl.program_id(1)

    @pl.when(k == 0)
    def _():
        acc_ref[...] = jnp.zeros_like(acc_ref)

    adj = adj_ref[...].astype(jnp.bfloat16)        # int8 -> bf16 upcast on VPU
    acc_ref[...] += jnp.dot(adj, h1k_ref[...], preferred_element_type=jnp.float32)

    @pl.when(k == pl.num_programs(1) - 1)
    def _():
        agg = invdeg_ref[...] * acc_ref[...]       # mean aggregation (f32 VPU)
        h2 = jnp.dot(agg.astype(jnp.bfloat16), w2_ref[...],
                     preferred_element_type=jnp.float32) + b2_ref[...]
        # TODO(synk): F.dropout with training=True and p>0 is stochastic; treated as identity (eval / p=0).
        y = (jnp.dot(h1t_ref[...], wl1_ref[...], preferred_element_type=jnp.float32)
             + jnp.dot(h2.astype(jnp.bfloat16), wl2_ref[...],
                       preferred_element_type=jnp.float32)
             + bl_ref[...])
        out_ref[...] = jnp.maximum(y, 0.0)         # F.relu


# ------------------------------ JAX wrapper --------------------------------- #
def block_forward(x, edge_index, params):
    """x: [N, in_dim] float32; edge_index: [2, E] int32 (row 0 = src, row 1 = dst)."""
    w1, b1, w2, b2, wl1, wl2, bl = params
    n, in_dim = x.shape
    out_dim = w1.shape[1]
    bf16, f32 = jnp.bfloat16, jnp.float32

    # Lane-dense padded dims. n_p: adjacency rows == columns == h1 rows,
    # padded to a multiple of 128 (lane / int8-tile friendly, no small-N blowup
    # beyond the 128-lane floor).
    d_in = _round_up(in_dim, 128)
    d_out = _round_up(out_dim, 128)
    n_p = _round_up(n, 128)

    # Row tile and contraction tile (both divide n_p, multiples of 128).
    tm = 256 if n_p % 256 == 0 else 128
    tk = next(t for t in range(min(n_p, 2048), 0, -128) if n_p % t == 0)

    # Plain-JAX glue, O(E) + one int8 N^2 scatter:
    #   adjacency built directly in int8 with edge multiplicity (scatter-add);
    #   degrees come from the edge list, not from an N^2 reduction.
    # TODO(synk): no self-loops are added before normalization; matches the
    # assumed conv layer, verify against the actual injected `layer`.
    src, dst = edge_index[0], edge_index[1]
    adj_i8 = jnp.zeros((n_p, n_p), jnp.int8).at[dst, src].add(jnp.int8(1))
    deg = jnp.zeros((n_p,), f32).at[dst].add(1.0)
    inv_deg = (1.0 / jnp.maximum(deg, 1.0)).reshape(n_p, 1)

    x_p = _pad2(x, n_p, d_in, bf16)
    w1_p = _pad2(w1, d_in, d_out, bf16)
    w2_p = _pad2(w2, d_out, d_out, bf16)
    wl1_p = _pad2(wl1, d_out, d_out, bf16)
    wl2_p = _pad2(wl2, d_out, d_out, bf16)
    b1_p = _pad2(b1, 1, d_out, f32)
    b2_p = _pad2(b2, 1, d_out, f32)
    bl_p = _pad2(bl, 1, d_out, f32)

    grid = (n_p // tm, n_p // tk)
    cparams = pltpu.CompilerParams(
        dimension_semantics=("parallel", "arbitrary"),
        vmem_limit_bytes=48 * 1024 * 1024)

    adj_spec = pl.BlockSpec((tm, tk), lambda i, k: (i, k))          # adjacency tile (int8)
    row_spec = lambda bs: pl.BlockSpec(bs, lambda i, k: (i, 0))     # per-row-tile stream
    kslab_spec = lambda bs: pl.BlockSpec(bs, lambda i, k: (k, 0))   # contraction slab
    const_spec = lambda bs: pl.BlockSpec(bs, lambda i, k: (0, 0))   # weights / biases

    # ----------------------- kernel 1: conv1 (sum aggregation) --------------
    cost1 = pl.CostEstimate(
        flops=2 * n_p * n_p * d_in + 2 * n_p * d_in * d_out,
        transcendentals=0,
        bytes_accessed=(n_p * n_p                            # int8 adjacency
                        + (n_p // tm) * n_p * d_in * 2       # x slabs (bf16, per row tile)
                        + d_in * d_out * 2                   # W1
                        + n_p * d_out * 2))                  # h1 out (bf16)
    h1_bf = pl.pallas_call(
        conv1_kernel,
        out_shape=jax.ShapeDtypeStruct((n_p, d_out), bf16),
        grid_spec=pltpu.PrefetchScalarGridSpec(
            num_scalar_prefetch=0, grid=grid,
            in_specs=[adj_spec,                      # adjacency tile (int8)
                      kslab_spec((tk, d_in)),        # x contraction slab (bf16)
                      const_spec((d_in, d_out)),     # W1
                      const_spec((1, d_out))],       # b1
            out_specs=row_spec((tm, d_out)),
            scratch_shapes=[pltpu.VMEM((tm, d_in), jnp.float32)]),  # A@x accumulator
        compiler_params=cparams,
        cost_estimate=cost1,
    )(adj_i8, x_p, w1_p, b1_p)

    # -------------- kernel 2: conv2 (mean aggregation) + lin + relu ---------
    cost2 = pl.CostEstimate(
        flops=2 * n_p * n_p * d_out + 6 * n_p * d_out * d_out,
        transcendentals=0,
        bytes_accessed=(n_p * n_p                            # int8 adjacency
                        + (n_p // tm) * n_p * d_out * 2      # h1 slabs (bf16)
                        + n_p * d_out * 2                    # h1 row tiles (bf16)
                        + n_p * 4                            # inv_deg
                        + 3 * d_out * d_out * 2              # W2, Wl1, Wl2
                        + n_p * d_out * 4))                  # output (f32)
    y = pl.pallas_call(
        conv2_lin_kernel,
        out_shape=jax.ShapeDtypeStruct((n_p, d_out), f32),
        grid_spec=pltpu.PrefetchScalarGridSpec(
            num_scalar_prefetch=0, grid=grid,
            in_specs=[adj_spec,                      # adjacency tile (int8)
                      kslab_spec((tk, d_out)),       # h1 contraction slab (bf16)
                      row_spec((tm, d_out)),         # h1 row tile (for lin/cat)
                      row_spec((tm, 1)),             # inv_deg row tile (f32)
                      const_spec((d_out, d_out)),    # W2
                      const_spec((1, d_out)),        # b2
                      const_spec((d_out, d_out)),    # Wl1
                      const_spec((d_out, d_out)),    # Wl2
                      const_spec((1, d_out))],       # bl
            out_specs=row_spec((tm, d_out)),
            scratch_shapes=[pltpu.VMEM((tm, d_out), jnp.float32)]),  # A@h1 accumulator
        compiler_params=cparams,
        cost_estimate=cost2,
    )(adj_i8, h1_bf, h1_bf, inv_deg, w2_p, b2_p, wl1_p, wl2_p, bl_p)

    return y[:n, :out_dim]


# --------------------------- parameter creation ----------------------------- #
def glorot_uniform(key, shape):
    stdv = math.sqrt(6.0 / (shape[-2] + shape[-1]))
    return jax.random.uniform(key, shape, jnp.float32, -stdv, stdv)


def make_params(key, in_dim, out_dim, num_layers=2):
    k1, k2, k3 = jax.random.split(key, 3)
    w1 = glorot_uniform(k1, (in_dim, out_dim))             # conv1 weight
    b1 = jnp.zeros((1, out_dim), jnp.float32)              # conv1 bias
    w2 = glorot_uniform(k2, (out_dim, out_dim))            # conv2 weight
    b2 = jnp.zeros((1, out_dim), jnp.float32)              # conv2 bias
    # torch.nn.Linear(num_layers*out_dim, out_dim): weight [out_dim, num_layers*out_dim]
    wl_t = glorot_uniform(k3, (out_dim, num_layers * out_dim))
    wl = wl_t.T                                            # [num_layers*out_dim, out_dim]
    wl1, wl2 = wl[:out_dim], wl[out_dim:]                  # split along cat axis
    bl = jnp.zeros((1, out_dim), jnp.float32)              # lin bias (zeros init)
    return (w1, b1, w2, b2, wl1, wl2, bl)


# ------------------------------- reference ---------------------------------- #
def block_reference(x, edge_index, params):
    """Pure-JAX reference mirroring the kernel's bf16-operand / f32-accumulate dots."""
    n = x.shape[0]
    src, dst = edge_index[0], edge_index[1]
    # Edge multiplicity counted (scatter-add), same as the kernel's int8 build.
    adj = jnp.zeros((n, n), jnp.float32).at[dst, src].add(1.0)
    inv_deg = 1.0 / jnp.maximum(jnp.sum(adj, axis=-1, keepdims=True), 1.0)
    w1, b1, w2, b2, wl1, wl2, bl = params

    def bdot(a, b):
        return jnp.dot(a.astype(jnp.bfloat16), b.astype(jnp.bfloat16),
                       preferred_element_type=jnp.float32)

    h1 = bdot(bdot(adj, x), w1) + b1
    h1 = h1.astype(jnp.bfloat16).astype(jnp.float32)       # kernel stores h1 as bf16
    agg2 = inv_deg * bdot(adj, h1)
    h2 = bdot(agg2, w2) + b2
    y = bdot(h1, wl1) + bdot(h2, wl2) + bl
    return jnp.maximum(y, 0.0)


if __name__ == "__main__":
    key = jax.random.PRNGKey(0)
    k_x, k_e, k_p = jax.random.split(key, 3)

    N, E, in_dim, out_dim = 16, 32, 8, 32
    x = jax.random.normal(k_x, (N, in_dim), jnp.float32)
    edge_index = jax.random.randint(k_e, (2, E), 0, N, jnp.int32)
    params = make_params(k_p, in_dim, out_dim, num_layers=2)

    out = block_forward(x, edge_index, params)
    jax.block_until_ready(out)

    ref = block_reference(x, edge_index, params)
    assert out.shape == (N, out_dim)
    assert jnp.allclose(out, ref, atol=2e-3, rtol=2e-3), "mismatch vs reference"

    print("KERNEL_OK")
</pallas_src>

<mosaic_0001>
module attributes {stable_mosaic.version = 11 : i64} {
  func.func @conv1_kernel(%arg0: i32, %arg1: i32, %arg2: memref<128x128xi8, #tpu.memory_space<vmem>>, %arg3: memref<128x128xbf16, #tpu.memory_space<vmem>>, %arg4: memref<128x128xbf16, #tpu.memory_space<vmem>>, %arg5: memref<1x128xf32, #tpu.memory_space<vmem>>, %arg6: memref<128x128xbf16, #tpu.memory_space<vmem>>, %arg7: memref<128x128xf32, #tpu.memory_space<vmem>>) attributes {dimension_semantics = [#tpu.dimension_semantics<parallel>, #tpu.dimension_semantics<arbitrary>], iteration_bounds = array<i64: 1, 1>, scalar_prefetch = 0 : i64, scratch_operands = 1 : i64, tpu.core_type = #tpu.core_type<tc>, window_params = [{transform_indices = @transform_0, window_bounds = array<i64: 128, 128>}, {transform_indices = @transform_1, window_bounds = array<i64: 128, 128>}, {pipeline_mode = #tpu.pipeline_mode<synchronous>, transform_indices = @transform_2, window_bounds = array<i64: 128, 128>}, {pipeline_mode = #tpu.pipeline_mode<synchronous>, transform_indices = @transform_3, window_bounds = array<i64: 1, 128>}, {transform_indices = @transform_4, window_bounds = array<i64: 128, 128>}]} {
    %c0_i32 = arith.constant 0 : i32
    %0 = arith.cmpi eq, %arg1, %c0_i32 : i32
    %1 = arith.extui %0 : i1 to i32
    %c0_i32_0 = arith.constant 0 : i32
    %2 = arith.cmpi ne, %1, %c0_i32_0 : i32
    scf.if %2 {
      %cst_10 = arith.constant 0.000000e+00 : f32
      %13 = vector.broadcast %cst_10 : f32 to vector<128x128xf32>
      %c0_11 = arith.constant 0 : index
      %c0_12 = arith.constant 0 : index
      %14 = vector.load %arg7[%c0_11, %c0_12] : memref<128x128xf32, #tpu.memory_space<vmem>>, vector<128x128xf32>
      tpu.vector_store %arg7[%c0_11, %c0_12], %13 {strides = array<i32>} : memref<128x128xf32, #tpu.memory_space<vmem>>, vector<128x128xf32>,
    } else {
    }
    %c0 = arith.constant 0 : index
    %c0_1 = arith.constant 0 : index
    %3 = vector.load %arg2[%c0, %c0_1] : memref<128x128xi8, #tpu.memory_space<vmem>>, vector<128x128xi8>
    %4 = arith.sitofp %3 : vector<128x128xi8> to vector<128x128xbf16>
    %c0_2 = arith.constant 0 : index
    %c0_3 = arith.constant 0 : index
    %5 = vector.load %arg7[%c0_2, %c0_3] : memref<128x128xf32, #tpu.memory_space<vmem>>, vector<128x128xf32>
    %c0_4 = arith.constant 0 : index
    %c0_5 = arith.constant 0 : index
    %6 = vector.load %arg3[%c0_4, %c0_5] : memref<128x128xbf16, #tpu.memory_space<vmem>>, vector<128x128xbf16>
    %cst = arith.constant dense<0.000000e+00> : vector<128x128xf32>
    %7 = tpu.matmul %4, %6, %cst {dimension_numbers = #tpu.dot_dimension_numbers<[1], [0], [0], [1], [0, 0, 1, 1], [], []>} : vector<128x128xbf16>, vector<128x128xbf16>, vector<128x128xf32> -> vector<128x128xf32>
    %8 = arith.addf %5, %7 : vector<128x128xf32>
    %c0_6 = arith.constant 0 : index
    %c0_7 = arith.constant 0 : index
    %9 = vector.load %arg7[%c0_6, %c0_7] : memref<128x128xf32, #tpu.memory_space<vmem>>, vector<128x128xf32>
    tpu.vector_store %arg7[%c0_6, %c0_7], %8 {strides = array<i32>} : memref<128x128xf32, #tpu.memory_space<vmem>>, vector<128x128xf32>,
    %c0_i32_8 = arith.constant 0 : i32
    %10 = arith.cmpi eq, %arg1, %c0_i32_8 : i32
    %11 = arith.extui %10 : i1 to i32
    %c0_i32_9 = arith.constant 0 : i32
    %12 = arith.cmpi ne, %11, %c0_i32_9 : i32
    scf.if %12 {
      %c0_10 = arith.constant 0 : index
      %c0_11 = arith.constant 0 : index
      %13 = vector.load %arg7[%c0_10, %c0_11] : memref<128x128xf32, #tpu.memory_space<vmem>>, vector<128x128xf32>
      %14 = arith.truncf %13 : vector<128x128xf32> to vector<128x128xbf16>
      %c0_12 = arith.constant 0 : index
      %c0_13 = arith.constant 0 : index
      %15 = vector.load %arg4[%c0_12, %c0_13] : memref<128x128xbf16, #tpu.memory_space<vmem>>, vector<128x128xbf16>
      %cst_14 = arith.constant dense<0.000000e+00> : vector<128x128xf32>
      %16 = tpu.matmul %14, %15, %cst_14 {dimension_numbers = #tpu.dot_dimension_numbers<[1], [0], [0], [1], [0, 0, 1, 1], [], []>} : vector<128x128xbf16>, vector<128x128xbf16>, vector<128x128xf32> -> vector<128x128xf32>
      %c0_15 = arith.constant 0 : index
      %c0_16 = arith.constant 0 : index
      %17 = vector.load %arg5[%c0_15, %c0_16] : memref<1x128xf32, #tpu.memory_space<vmem>>, vector<1x128xf32>
      %18 = vector.broadcast %17 : vector<1x128xf32> to vector<128x128xf32>
      %19 = arith.addf %16, %18 : vector<128x128xf32>
      %20 = arith.truncf %19 : vector<128x128xf32> to vector<128x128xbf16>
      %c0_17 = arith.constant 0 : index
      %c0_18 = arith.constant 0 : index
      %21 = vector.load %arg6[%c0_17, %c0_18] : memref<128x128xbf16, #tpu.memory_space<vmem>>, vector<128x128xbf16>
      tpu.vector_store %arg6[%c0_17, %c0_18], %20 {strides = array<i32>} : memref<128x128xbf16, #tpu.memory_space<vmem>>, vector<128x128xbf16>,
    } else {
    }
    return
  }
  func.func @transform_0(%arg0: i32, %arg1: i32) -> (i32, i32) {
    %c0_i32 = arith.constant 0 : i32
    return %arg0, %arg1 : i32, i32
  }
  func.func @transform_1(%arg0: i32, %arg1: i32) -> (i32, i32) {
    %c0_i32 = arith.constant 0 : i32
    %c0_i32_0 = arith.constant 0 : i32
    return %arg1, %c0_i32 : i32, i32
  }
  func.func @transform_2(%arg0: i32, %arg1: i32) -> (i32, i32) {
    %c0_i32 = arith.constant 0 : i32
    %c0_i32_0 = arith.constant 0 : i32
    %c0_i32_1 = arith.constant 0 : i32
    return %c0_i32, %c0_i32_0 : i32, i32
  }
  func.func @transform_3(%arg0: i32, %arg1: i32) -> (i32, i32) {
    %c0_i32 = arith.constant 0 : i32
    %c0_i32_0 = arith.constant 0 : i32
    %c0_i32_1 = arith.constant 0 : i32
    return %c0_i32, %c0_i32_0 : i32, i32
  }
  func.func @transform_4(%arg0: i32, %arg1: i32) -> (i32, i32) {
    %c0_i32 = arith.constant 0 : i32
    %c0_i32_0 = arith.constant 0 : i32
    return %arg0, %c0_i32 : i32, i32
  }
}

</mosaic_0001>

<llo_original>
// kernel: tpu_custom_call.1
$region0: #{tpu_custom_call.1}
  #allocation0 [shape = 'u32[]', space=smem, size = 0x4, offset = 0x4, fixed_abs, tag = 'smem constant byte address 0x4 - core index']
  #allocation1 [shape = 'u32[144,128]{1,0:T(1,128)}', space=vmem, size = 0x12000, scoped, tag = 'internal scratch']
  #allocation2 [shape = 'f32[128,128]{1,0:T(8,128)}', space=vmem, size = 0x10000, scoped, tag = 'scratch operand']
  %s0 = inlined_call_operand.hbm [shape: s8[128,128], index: 0, kind: input, shape index: {}]
  %s1 = inlined_call_operand.hbm [shape: bf16[128,128], index: 1, kind: input, shape index: {}]
  %s2 = inlined_call_operand.hbm [shape: bf16[128,128], index: 2, kind: input, shape index: {}]
  %s3 = inlined_call_operand.vmem [shape: f32[1,128], index: 3, kind: input, shape index: {}]
  %s4 = inlined_call_operand.hbm [shape: bf16[128,128], index: 4, kind: output, shape index: {}]
  %s5 = sld [smem:[#allocation0]]
  $region46: #{tpu_custom_call.1} parent=0
    _
  %s7 = ssub.s32 1, %s5
  %s8 = scalar_select 0, %s7, %s5
  $region1: #{tpu_custom_call.1} parent=0
    #allocation3 [shape = 'u8[16384]{0}', space=vmem, size = 0x4000, scoped, tag = 'input window, operand 0, single buffered']
    #allocation4 [shape = 's32[1]{0}', space=sflag, size = 0x4, scoped, tag = 'scoped memory for tpu_custom_call.1']
    #allocation5 [shape = 's32[1]{0}', space=sflag, size = 0x4, scoped, tag = 'scoped memory for tpu_custom_call.1']
    #allocation6 [shape = 'u8[32768]{0}', space=vmem, size = 0x8000, scoped, tag = 'input window, operand 1, single buffered']
    #allocation7 [shape = 's32[1]{0}', space=sflag, size = 0x4, scoped, tag = 'scoped memory for tpu_custom_call.1']
    #allocation8 [shape = 'u8[32768]{0}', space=vmem, size = 0x8000, scoped, tag = 'input window, operand 2, single buffered']
    #allocation9 [shape = 'u8[32768]{0}', space=vmem, size = 0x8000, scoped, tag = 'output window, operand 0, single buffered']
    %9 = vsyncpa [#allocation4], 0
    %10 = vsyncpa [#allocation7], 0
    %11 = vsyncpa [#allocation5], 0
    // Predicated region
    $region2: #{tpu_custom_call.1} parent=1 // pred_check
      _
    $region3: #{tpu_custom_call.1} parent=1 // pred_check_branch
      %13 = sbr.rel (0) target = $region5
    $region4: #{tpu_custom_call.1} parent=1 // pred_region
      %s15 = ssub.s32 512, 512
      %16 = vsyncadd [#allocation4], %s15
      %s17 = sshll.u32 [#allocation3], 4
      %s18 = int_to_ptr.vmem [resolvable:$true] %s17
      %23 = dma.hbm_to_vmem [thread:$0]  %s0, 512, %s18, [#allocation4], 128, 128, 8
    $region5: #{tpu_custom_call.1} parent=1 // pred_fallthru
      _
    // Predicated region
    $region6: #{tpu_custom_call.1} parent=1 // pred_check
      _
    $region7: #{tpu_custom_call.1} parent=1 // pred_check_branch
      %25 = sbr.rel (0) target = $region9
    $region8: #{tpu_custom_call.1} parent=1 // pred_region
      %s27 = ssub.s32 1024, 1024
      %28 = vsyncadd [#allocation7], %s27
      %s29 = sshll.u32 [#allocation6], 4
      %s30 = int_to_ptr.vmem [resolvable:$true] %s29
      %35 = dma.hbm_to_vmem [thread:$0]  %s1, 1024, %s30, [#allocation7], 64, 64, 4
    $region9: #{tpu_custom_call.1} parent=1 // pred_fallthru
      _
    // Predicated region
    $region10: #{tpu_custom_call.1} parent=1 // pred_check
      _
    $region11: #{tpu_custom_call.1} parent=1 // pred_check_branch
      %37 = sbr.rel (0) target = $region13
    $region12: #{tpu_custom_call.1} parent=1 // pred_region
      %s39 = ssub.s32 1024, 1024
      %40 = vsyncadd [#allocation7], %s39
      %s41 = sshll.u32 [#allocation8], 4
      %s42 = int_to_ptr.vmem [resolvable:$true] %s41
      %47 = dma.hbm_to_vmem [thread:$0]  %s2, 1024, %s42, [#allocation7], 64, 64, 4
    $region13: #{tpu_custom_call.1} parent=1 // pred_fallthru
      _
    // Predicated region
    $region14: #{tpu_custom_call.1} parent=1 // pred_check
      _
    $region15: #{tpu_custom_call.1} parent=1 // pred_check_branch
      %49 = sbr.rel (0) target = $region17
    $region16: #{tpu_custom_call.1} parent=1 // pred_region
      _
    $region17: #{tpu_custom_call.1} parent=1 // pred_fallthru
      _
    // Predicated region
    $region18: #{tpu_custom_call.1} parent=1 // pred_check
      _
    $region19: #{tpu_custom_call.1} parent=1 // pred_check_branch
      %51 = sbr.rel (0) target = $region21
    $region20: #{tpu_custom_call.1} parent=1 // pred_region
      %52 = dma.done [#allocation4], 512
    $region21: #{tpu_custom_call.1} parent=1 // pred_fallthru
      _
    // Predicated region
    $region22: #{tpu_custom_call.1} parent=1 // pred_check
      _
    $region23: #{tpu_custom_call.1} parent=1 // pred_check_branch
      %54 = sbr.rel (0) target = $region25
    $region24: #{tpu_custom_call.1} parent=1 // pred_region
      %55 = dma.done [#allocation7], 1024
    $region25: #{tpu_custom_call.1} parent=1 // pred_fallthru
      _
    // Predicated region
    $region26: #{tpu_custom_call.1} parent=1 // pred_check
      _
    $region27: #{tpu_custom_call.1} parent=1 // pred_check_branch
      %57 = sbr.rel (0) target = $region29
    $region28: #{tpu_custom_call.1} parent=1 // pred_region
      %58 = dma.done [#allocation7], 1024
    $region29: #{tpu_custom_call.1} parent=1 // pred_fallthru
      _
    %p60 = scmp.eq.s32.totalorder 0, 0
    // Predicated region
    $region30: #{tpu_custom_call.1} parent=1 // pred_check
      %p61 = pneg %p60
    $region31: #{tpu_custom_call.1} parent=1 // pred_check_branch
      %63 = sbr.rel (%p61) target = $region33
    $region32: #{tpu_custom_call.1} parent=1 // pred_region
      %64 = vst [vmem:[#allocation2] sm:$0xff] 0.0
      %65 = vst [vmem:[#allocation2 + $0x8] sm:$0xff] 0.0
      %66 = vst [vmem:[#allocation2 + $0x10] sm:$0xff] 0.0
      %67 = vst [vmem:[#allocation2 + $0x18] sm:$0xff] 0.0
      %68 = vst [vmem:[#allocation2 + $0x20] sm:$0xff] 0.0
      %69 = vst [vmem:[#allocation2 + $0x28] sm:$0xff] 0.0
      %70 = vst [vmem:[#allocation2 + $0x30] sm:$0xff] 0.0
      %71 = vst [vmem:[#allocation2 + $0x38] sm:$0xff] 0.0
      %72 = vst [vmem:[#allocation2 + $0x40] sm:$0xff] 0.0
      %73 = vst [vmem:[#allocation2 + $0x48] sm:$0xff] 0.0
      %74 = vst [vmem:[#allocation2 + $0x50] sm:$0xff] 0.0
      %75 = vst [vmem:[#allocation2 + $0x58] sm:$0xff] 0.0
      %76 = vst [vmem:[#allocation2 + $0x60] sm:$0xff] 0.0
      %77 = vst [vmem:[#allocation2 + $0x68] sm:$0xff] 0.0
      %78 = vst [vmem:[#allocation2 + $0x70] sm:$0xff] 0.0
      %79 = vst [vmem:[#allocation2 + $0x78] sm:$0xff] 0.0
    $region33: #{tpu_custom_call.1} parent=1 // pred_fallthru
      _
    %v80 = vld [vmem:[#allocation3] sm:$0xff]
    %v81 = vld [vmem:[#allocation3 + $0x8] sm:$0xff]
    %v82 = vld [vmem:[#allocation3 + $0x10] sm:$0xff]
    %v83 = vld [vmem:[#allocation3 + $0x18] sm:$0xff]
    %v84 = vunpack.c.l.s8.bf16 %v80
    %v85 = vunpack.c.h.s8.bf16 %v80
    %v86 = vunpack.c.l.s8.bf16 %v81
    %v87 = vunpack.c.h.s8.bf16 %v81
    %v88 = vunpack.c.l.s8.bf16 %v82
    %v89 = vunpack.c.h.s8.bf16 %v82
    %v90 = vunpack.c.l.s8.bf16 %v83
    %v91 = vunpack.c.h.s8.bf16 %v83
    %v92 = vld [vmem:[#allocation2] sm:$0xff]
    %v93 = vld [vmem:[#allocation2 + $0x8] sm:$0xff]
    %v94 = vld [vmem:[#allocation2 + $0x10] sm:$0xff]
    %v95 = vld [vmem:[#allocation2 + $0x18] sm:$0xff]
    %v96 = vld [vmem:[#allocation2 + $0x20] sm:$0xff]
    %v97 = vld [vmem:[#allocation2 + $0x28] sm:$0xff]
    %v98 = vld [vmem:[#allocation2 + $0x30] sm:$0xff]
    %v99 = vld [vmem:[#allocation2 + $0x38] sm:$0xff]
    %v100 = vld [vmem:[#allocation2 + $0x40] sm:$0xff]
    %v101 = vld [vmem:[#allocation2 + $0x48] sm:$0xff]
    %v102 = vld [vmem:[#allocation2 + $0x50] sm:$0xff]
    %v103 = vld [vmem:[#allocation2 + $0x58] sm:$0xff]
    %v104 = vld [vmem:[#allocation2 + $0x60] sm:$0xff]
    %v105 = vld [vmem:[#allocation2 + $0x68] sm:$0xff]
    %v106 = vld [vmem:[#allocation2 + $0x70] sm:$0xff]
    %v107 = vld [vmem:[#allocation2 + $0x78] sm:$0xff]
    %v108 = vld [vmem:[#allocation6] sm:$0xf]
    %v109 = vld [vmem:[#allocation6 + $0x4] sm:$0xf]
    %v110 = vld [vmem:[#allocation6 + $0x8] sm:$0xf]
    %v111 = vld [vmem:[#allocation6 + $0xc] sm:$0xf]
    %v112 = vld [vmem:[#allocation6 + $0x10] sm:$0xf]
    %v113 = vld [vmem:[#allocation6 + $0x14] sm:$0xf]
    %v114 = vld [vmem:[#allocation6 + $0x18] sm:$0xf]
    %v115 = vld [vmem:[#allocation6 + $0x1c] sm:$0xf]
    %v116 = vld [vmem:[#allocation6 + $0x20] sm:$0xf]
    %v117 = vld [vmem:[#allocation6 + $0x24] sm:$0xf]
    %v118 = vld [vmem:[#allocation6 + $0x28] sm:$0xf]
    %v119 = vld [vmem:[#allocation6 + $0x2c] sm:$0xf]
    %v120 = vld [vmem:[#allocation6 + $0x30] sm:$0xf]
    %v121 = vld [vmem:[#allocation6 + $0x34] sm:$0xf]
    %v122 = vld [vmem:[#allocation6 + $0x38] sm:$0xf]
    %v123 = vld [vmem:[#allocation6 + $0x3c] sm:$0xf]
    %v140 = vunpack.c.l.b16 %v108
    %v141 = vunpack.c.l.b16 %v109
    %v142 = vunpack.c.l.b16 %v110
    %v143 = vunpack.c.l.b16 %v111
    %v144 = vunpack.c.l.b16 %v112
    %v145 = vunpack.c.l.b16 %v113
    %v146 = vunpack.c.l.b16 %v114
    %v147 = vunpack.c.l.b16 %v115
    %v148 = vunpack.c.l.b16 %v116
    %v149 = vunpack.c.l.b16 %v117
    %v150 = vunpack.c.l.b16 %v118
    %v151 = vunpack.c.l.b16 %v119
    %v152 = vunpack.c.l.b16 %v120
    %v153 = vunpack.c.l.b16 %v121
    %v154 = vunpack.c.l.b16 %v122
    %v155 = vunpack.c.l.b16 %v123
    %v156 = vpack.c.b16 %v141, %v140
    %v157 = vpack.c.b16 %v143, %v142
    %v158 = vpack.c.b16 %v145, %v144
    %v159 = vpack.c.b16 %v147, %v146
    %v160 = vpack.c.b16 %v149, %v148
    %v161 = vpack.c.b16 %v151, %v150
    %v162 = vpack.c.b16 %v153, %v152
    %v163 = vpack.c.b16 %v155, %v154
    %172 = vmatprep.subr.bf16.mxu0 0
    %173 = vmatpush1.bf16.msra.mxu0 %v163
    %174 = vmatprep.subr.bf16.mxu0 0
    %175 = vmatpush1.bf16.msra.mxu0 %v162
    %176 = vmatprep.subr.bf16.mxu0 0
    %177 = vmatpush1.bf16.msra.mxu0 %v161
    %178 = vmatprep.subr.bf16.mxu0 0
    %179 = vmatpush1.bf16.msra.mxu0 %v160
    %180 = vmatprep.subr.bf16.mxu0 0
    %181 = vmatpush1.bf16.msra.mxu0 %v159
    %182 = vmatprep.subr.bf16.mxu0 0
    %183 = vmatpush1.bf16.msra.mxu0 %v158
    %184 = vmatprep.subr.bf16.mxu0 0
    %185 = vmatpush1.bf16.msra.mxu0 %v157
    %186 = vmatprep.subr.bf16.mxu0 0
    %187 = vmatpush1.bf16.msra.mxu0 %v156
    %188 = vmatprep.subr.bf16.mxu0 0
    %189 = vmatpush2.bf16.msra.mxu0 0
    %190 = vmatprep.subr.bf16.mxu0 0
    %191 = vmatpush2.bf16.msra.mxu0 0
    %192 = vmatprep.subr.bf16.mxu0 0
    %193 = vmatpush2.bf16.msra.mxu0 0
    %194 = vmatprep.subr.bf16.mxu0 0
    %195 = vmatpush2.bf16.msra.mxu0 0
    %196 = vmatprep.subr.bf16.mxu0 0
    %197 = vmatpush2.bf16.msra.mxu0 0
    %198 = vmatprep.subr.bf16.mxu0 0
    %199 = vmatpush2.bf16.msra.mxu0 0
    %200 = vmatprep.subr.bf16.mxu0 0
    %201 = vmatpush2.bf16.msra.mxu0 0
    %202 = vmatprep.subr.bf16.mxu0 0
    %203 = vmatpush2.bf16.msra.mxu0 0
    %204 = vmatprep.mubr.bf16.mxu0 0
    %205 = vmatmul.mubr.bf16.gmra.mxu0 %v84
    %v206 = vpop.f32.mrf.mxu0
    %v207 = vadd.f32 0.0, %v206
    %v208 = vpop.f32.mrf.mxu0
    %v209 = vpop.f32.mrf.mxu0
    %v210 = vadd.f32 0.0, %v209
    %v211 = vpop.f32.mrf.mxu0
    %212 = vmatprep.mubr.bf16.mxu0 0
    %213 = vmatmul.mubr.bf16.gmra.mxu0 %v85
    %v214 = vpop.f32.mrf.mxu0
    %v215 = vadd.f32 0.0, %v214
    %v216 = vpop.f32.mrf.mxu0
    %v217 = vpop.f32.mrf.mxu0
    %v218 = vadd.f32 0.0, %v217
    %v219 = vpop.f32.mrf.mxu0
    %220 = vmatprep.mubr.bf16.mxu0 0
    %221 = vmatmul.mubr.bf16.gmra.mxu0 %v86
    %v222 = vpop.f32.mrf.mxu0
    %v223 = vadd.f32 0.0, %v222
    %v224 = vpop.f32.mrf.mxu0
    %v225 = vpop.f32.mrf.mxu0
    %v226 = vadd.f32 0.0, %v225
    %v227 = vpop.f32.mrf.mxu0
    %228 = vmatprep.mubr.bf16.mxu0 0
    %229 = vmatmul.mubr.bf16.gmra.mxu0 %v87
    %v230 = vpop.f32.mrf.mxu0
    %v231 = vadd.f32 0.0, %v230
    %v232 = vpop.f32.mrf.mxu0
    %v233 = vpop.f32.mrf.mxu0
    %v234 = vadd.f32 0.0, %v233
    %v235 = vpop.f32.mrf.mxu0
    %236 = vmatprep.mubr.bf16.mxu0 0
    %237 = vmatmul.mubr.bf16.gmra.mxu0 %v88
    %v238 = vpop.f32.mrf.mxu0
    %v239 = vadd.f32 0.0, %v238
    %v240 = vpop.f32.mrf.mxu0
    %v241 = vpop.f32.mrf.mxu0
    %v242 = vadd.f32 0.0, %v241
    %v243 = vpop.f32.mrf.mxu0
    %244 = vmatprep.mubr.bf16.mxu0 0
    %245 = vmatmul.mubr.bf16.gmra.mxu0 %v89
    %v246 = vpop.f32.mrf.mxu0
    %v247 = vadd.f32 0.0, %v246
    %v248 = vpop.f32.mrf.mxu0
    %v249 = vpop.f32.mrf.mxu0
    %v250 = vadd.f32 0.0, %v249
    %v251 = vpop.f32.mrf.mxu0
    %252 = vmatprep.mubr.bf16.mxu0 0
    %253 = vmatmul.mubr.bf16.gmra.mxu0 %v90
    %v254 = vpop.f32.mrf.mxu0
    %v255 = vadd.f32 0.0, %v254
    %v256 = vpop.f32.mrf.mxu0
    %v257 = vpop.f32.mrf.mxu0
    %v258 = vadd.f32 0.0, %v257
    %v259 = vpop.f32.mrf.mxu0
    %260 = vmatprep.mubr.bf16.mxu0 0
    %261 = vmatmul.mubr.bf16.gmra.mxu0 %v91
    %v262 = vpop.f32.mrf.mxu0
    %v263 = vadd.f32 0.0, %v262
    %v264 = vpop.f32.mrf.mxu0
    %v265 = vpop.f32.mrf.mxu0
    %v266 = vadd.f32 0.0, %v265
    %v267 = vpop.f32.mrf.mxu0
    %268 = vdwg.mxu0
    %v269 = vadd.f32 %v92, %v207
    %v270 = vadd.f32 %v93, %v210
    %v271 = vadd.f32 %v94, %v215
    %v272 = vadd.f32 %v95, %v218
    %v273 = vadd.f32 %v96, %v223
    %v274 = vadd.f32 %v97, %v226
    %v275 = vadd.f32 %v98, %v231
    %v276 = vadd.f32 %v99, %v234
    %v277 = vadd.f32 %v100, %v239
    %v278 = vadd.f32 %v101, %v242
    %v279 = vadd.f32 %v102, %v247
    %v280 = vadd.f32 %v103, %v250
    %v281 = vadd.f32 %v104, %v255
    %v282 = vadd.f32 %v105, %v258
    %v283 = vadd.f32 %v106, %v263
    %v284 = vadd.f32 %v107, %v266
    %285 = vst [vmem:[#allocation2] sm:$0xff] %v269
    %286 = vst [vmem:[#allocation2 + $0x8] sm:$0xff] %v270
    %287 = vst [vmem:[#allocation2 + $0x10] sm:$0xff] %v271
    %288 = vst [vmem:[#allocation2 + $0x18] sm:$0xff] %v272
    %289 = vst [vmem:[#allocation2 + $0x20] sm:$0xff] %v273
    %290 = vst [vmem:[#allocation2 + $0x28] sm:$0xff] %v274
    %291 = vst [vmem:[#allocation2 + $0x30] sm:$0xff] %v275
    %292 = vst [vmem:[#allocation2 + $0x38] sm:$0xff] %v276
    %293 = vst [vmem:[#allocation2 + $0x40] sm:$0xff] %v277
    %294 = vst [vmem:[#allocation2 + $0x48] sm:$0xff] %v278
    %295 = vst [vmem:[#allocation2 + $0x50] sm:$0xff] %v279
    %296 = vst [vmem:[#allocation2 + $0x58] sm:$0xff] %v280
    %297 = vst [vmem:[#allocation2 + $0x60] sm:$0xff] %v281
    %298 = vst [vmem:[#allocation2 + $0x68] sm:$0xff] %v282
    %299 = vst [vmem:[#allocation2 + $0x70] sm:$0xff] %v283
    %300 = vst [vmem:[#allocation2 + $0x78] sm:$0xff] %v284
    // Predicated region
    $region34: #{tpu_custom_call.1} parent=1 // pred_check
      %p301 = pneg %p60
    $region35: #{tpu_custom_call.1} parent=1 // pred_check_branch
      %303 = sbr.rel (%p301) target = $region37
    $region36: #{tpu_custom_call.1} parent=1 // pred_region
      %v304 = vld [vmem:[#allocation2] sm:$0xff]
      %v305 = vld [vmem:[#allocation2 + $0x8] sm:$0xff]
      %v306 = vld [vmem:[#allocation2 + $0x10] sm:$0xff]
      %v307 = vld [vmem:[#allocation2 + $0x18] sm:$0xff]
      %v308 = vld [vmem:[#allocation2 + $0x20] sm:$0xff]
      %v309 = vld [vmem:[#allocation2 + $0x28] sm:$0xff]
      %v310 = vld [vmem:[#allocation2 + $0x30] sm:$0xff]
      %v311 = vld [vmem:[#allocation2 + $0x38] sm:$0xff]
      %v312 = vld [vmem:[#allocation2 + $0x40] sm:$0xff]
      %v313 = vld [vmem:[#allocation2 + $0x48] sm:$0xff]
      %v314 = vld [vmem:[#allocation2 + $0x50] sm:$0xff]
      %v315 = vld [vmem:[#allocation2 + $0x58] sm:$0xff]
      %v316 = vld [vmem:[#allocation2 + $0x60] sm:$0xff]
      %v317 = vld [vmem:[#allocation2 + $0x68] sm:$0xff]
      %v318 = vld [vmem:[#allocation2 + $0x70] sm:$0xff]
      %v319 = vld [vmem:[#allocation2 + $0x78] sm:$0xff]
      %v320 = vpack.c.bf16 %v305, %v304
      %v321 = vpack.c.bf16 %v307, %v306
      %v322 = vpack.c.bf16 %v309, %v308
      %v323 = vpack.c.bf16 %v311, %v310
      %v324 = vpack.c.bf16 %v313, %v312
      %v325 = vpack.c.bf16 %v315, %v314
      %v326 = vpack.c.bf16 %v317, %v316
      %v327 = vpack.c.bf16 %v319, %v318
      %v328 = vld [vmem:[#allocation8] sm:$0xf]
      %v329 = vld [vmem:[#allocation8 + $0x4] sm:$0xf]
      %v330 = vld [vmem:[#allocation8 + $0x8] sm:$0xf]
      %v331 = vld [vmem:[#allocation8 + $0xc] sm:$0xf]
      %v332 = vld [vmem:[#allocation8 + $0x10] sm:$0xf]
      %v333 = vld [vmem:[#allocation8 + $0x14] sm:$0xf]
      %v334 = vld [vmem:[#allocation8 + $0x18] sm:$0xf]
      %v335 = vld [vmem:[#allocation8 + $0x1c] sm:$0xf]
      %v336 = vld [vmem:[#allocation8 + $0x20] sm:$0xf]
      %v337 = vld [vmem:[#allocation8 + $0x24] sm:$0xf]
      %v338 = vld [vmem:[#allocation8 + $0x28] sm:$0xf]
      %v339 = vld [vmem:[#allocation8 + $0x2c] sm:$0xf]
      %v340 = vld [vmem:[#allocation8 + $0x30] sm:$0xf]
      %v341 = vld [vmem:[#allocation8 + $0x34] sm:$0xf]
      %v342 = vld [vmem:[#allocation8 + $0x38] sm:$0xf]
      %v343 = vld [vmem:[#allocation8 + $0x3c] sm:$0xf]
      %v344 = vld [vmem:[%s3] sm:$0x1]
      %v346 = vlaneseq
      %v347 = vshrl.u32 %v346, 7
      %v348 = vsub.s32 0, %v347
      %v349 = vrot.slane %v344, %v348
      %v367 = vunpack.c.l.b16 %v328
      %v368 = vunpack.c.l.b16 %v329
      %v369 = vunpack.c.l.b16 %v330
      %v370 = vunpack.c.l.b16 %v331
      %v371 = vunpack.c.l.b16 %v332
      %v372 = vunpack.c.l.b16 %v333
      %v373 = vunpack.c.l.b16 %v334
      %v374 = vunpack.c.l.b16 %v335
      %v375 = vunpack.c.l.b16 %v336
      %v376 = vunpack.c.l.b16 %v337
      %v377 = vunpack.c.l.b16 %v338
      %v378 = vunpack.c.l.b16 %v339
      %v379 = vunpack.c.l.b16 %v340
      %v380 = vunpack.c.l.b16 %v341
      %v381 = vunpack.c.l.b16 %v342
      %v382 = vunpack.c.l.b16 %v343
      %v383 = vpack.c.b16 %v368, %v367
      %v384 = vpack.c.b16 %v370, %v369
      %v385 = vpack.c.b16 %v372, %v371
      %v386 = vpack.c.b16 %v374, %v373
      %v387 = vpack.c.b16 %v376, %v375
      %v388 = vpack.c.b16 %v378, %v377
      %v389 = vpack.c.b16 %v380, %v379
      %v390 = vpack.c.b16 %v382, %v381
      %399 = vmatprep.subr.bf16.mxu0 0
      %400 = vmatpush1.bf16.msra.mxu0 %v390
      %401 = vmatprep.subr.bf16.mxu0 0
      %402 = vmatpush1.bf16.msra.mxu0 %v389
      %403 = vmatprep.subr.bf16.mxu0 0
      %404 = vmatpush1.bf16.msra.mxu0 %v388
      %405 = vmatprep.subr.bf16.mxu0 0
      %406 = vmatpush1.bf16.msra.mxu0 %v387
      %407 = vmatprep.subr.bf16.mxu0 0
      %408 = vmatpush1.bf16.msra.mxu0 %v386
      %409 = vmatprep.subr.bf16.mxu0 0
      %410 = vmatpush1.bf16.msra.mxu0 %v385
      %411 = vmatprep.subr.bf16.mxu0 0
      %412 = vmatpush1.bf16.msra.mxu0 %v384
      %413 = vmatprep.subr.bf16.mxu0 0
      %414 = vmatpush1.bf16.msra.mxu0 %v383
      %415 = vmatprep.subr.bf16.mxu0 0
      %416 = vmatpush2.bf16.msra.mxu0 0
      %417 = vmatprep.subr.bf16.mxu0 0
      %418 = vmatpush2.bf16.msra.mxu0 0
      %419 = vmatprep.subr.bf16.mxu0 0
      %420 = vmatpush2.bf16.msra.mxu0 0
      %421 = vmatprep.subr.bf16.mxu0 0
      %422 = vmatpush2.bf16.msra.mxu0 0
      %423 = vmatprep.subr.bf16.mxu0 0
      %424 = vmatpush2.bf16.msra.mxu0 0
      %425 = vmatprep.subr.bf16.mxu0 0
      %426 = vmatpush2.bf16.msra.mxu0 0
      %427 = vmatprep.subr.bf16.mxu0 0
      %428 = vmatpush2.bf16.msra.mxu0 0
      %429 = vmatprep.subr.bf16.mxu0 0
      %430 = vmatpush2.bf16.msra.mxu0 0
      %431 = vmatprep.mubr.bf16.mxu0 0
      %432 = vmatmul.mubr.bf16.gmra.mxu0 %v320
      %v433 = vpop.f32.mrf.mxu0
      %v434 = vadd.f32 %v349, %v433
      %v435 = vpop.f32.mrf.mxu0
      %v436 = vpop.f32.mrf.mxu0
      %v437 = vadd.f32 %v349, %v436
      %v438 = vpop.f32.mrf.mxu0
      %439 = vmatprep.mubr.bf16.mxu0 0
      %440 = vmatmul.mubr.bf16.gmra.mxu0 %v321
      %v441 = vpop.f32.mrf.mxu0
      %v442 = vadd.f32 %v349, %v441
      %v443 = vpop.f32.mrf.mxu0
      %v444 = vpop.f32.mrf.mxu0
      %v445 = vadd.f32 %v349, %v444
      %v446 = vpop.f32.mrf.mxu0
      %447 = vmatprep.mubr.bf16.mxu0 0
      %448 = vmatmul.mubr.bf16.gmra.mxu0 %v322
      %v449 = vpop.f32.mrf.mxu0
      %v450 = vadd.f32 %v349, %v449
      %v451 = vpop.f32.mrf.mxu0
      %v452 = vpop.f32.mrf.mxu0
      %v453 = vadd.f32 %v349, %v452
      %v454 = vpop.f32.mrf.mxu0
      %455 = vmatprep.mubr.bf16.mxu0 0
      %456 = vmatmul.mubr.bf16.gmra.mxu0 %v323
      %v457 = vpop.f32.mrf.mxu0
      %v458 = vadd.f32 %v349, %v457
      %v459 = vpop.f32.mrf.mxu0
      %v460 = vpop.f32.mrf.mxu0
      %v461 = vadd.f32 %v349, %v460
      %v462 = vpop.f32.mrf.mxu0
      %463 = vmatprep.mubr.bf16.mxu0 0
      %464 = vmatmul.mubr.bf16.gmra.mxu0 %v324
      %v465 = vpop.f32.mrf.mxu0
      %v466 = vadd.f32 %v349, %v465
      %v467 = vpop.f32.mrf.mxu0
      %v468 = vpop.f32.mrf.mxu0
      %v469 = vadd.f32 %v349, %v468
      %v470 = vpop.f32.mrf.mxu0
      %471 = vmatprep.mubr.bf16.mxu0 0
      %472 = vmatmul.mubr.bf16.gmra.mxu0 %v325
      %v473 = vpop.f32.mrf.mxu0
      %v474 = vadd.f32 %v349, %v473
      %v475 = vpop.f32.mrf.mxu0
      %v476 = vpop.f32.mrf.mxu0
      %v477 = vadd.f32 %v349, %v476
      %v478 = vpop.f32.mrf.mxu0
      %479 = vmatprep.mubr.bf16.mxu0 0
      %480 = vmatmul.mubr.bf16.gmra.mxu0 %v326
      %v481 = vpop.f32.mrf.mxu0
      %v482 = vadd.f32 %v349, %v481
      %v483 = vpop.f32.mrf.mxu0
      %v484 = vpop.f32.mrf.mxu0
      %v485 = vadd.f32 %v349, %v484
      %v486 = vpop.f32.mrf.mxu0
      %487 = vmatprep.mubr.bf16.mxu0 0
      %488 = vmatmul.mubr.bf16.gmra.mxu0 %v327
      %v489 = vpop.f32.mrf.mxu0
      %v490 = vadd.f32 %v349, %v489
      %v491 = vpop.f32.mrf.mxu0
      %v492 = vpop.f32.mrf.mxu0
      %v493 = vadd.f32 %v349, %v492
      %v494 = vpop.f32.mrf.mxu0
      %495 = vdwg.mxu0
      %v496 = vpack.c.bf16 %v437, %v434
      %v497 = vpack.c.bf16 %v445, %v442
      %v498 = vpack.c.bf16 %v453, %v450
      %v499 = vpack.c.bf16 %v461, %v458
      %v500 = vpack.c.bf16 %v469, %v466
      %v501 = vpack.c.bf16 %v477, %v474
      %v502 = vpack.c.bf16 %v485, %v482
      %v503 = vpack.c.bf16 %v493, %v490
      %v512 = vunpack.c.l.b16 %v496
      %v513 = vunpack.c.h.b16 %v496
      %v514 = vunpack.c.l.b16 %v497
      %v515 = vunpack.c.h.b16 %v497
      %v516 = vunpack.c.l.b16 %v498
      %v517 = vunpack.c.h.b16 %v498
      %v518 = vunpack.c.l.b16 %v499
      %v519 = vunpack.c.h.b16 %v499
      %v520 = vunpack.c.l.b16 %v500
      %v521 = vunpack.c.h.b16 %v500
      %v522 = vunpack.c.l.b16 %v501
      %v523 = vunpack.c.h.b16 %v501
      %v524 = vunpack.c.l.b16 %v502
      %v525 = vunpack.c.h.b16 %v502
      %v526 = vunpack.c.l.b16 %v503
      %v527 = vunpack.c.h.b16 %v503
      %v528 = vpack.c.b16 %v512, %v512
      %v529 = vpack.c.b16 %v513, %v513
      %v530 = vpack.c.b16 %v514, %v514
      %v531 = vpack.c.b16 %v515, %v515
      %v532 = vpack.c.b16 %v516, %v516
      %v533 = vpack.c.b16 %v517, %v517
      %v534 = vpack.c.b16 %v518, %v518
      %v535 = vpack.c.b16 %v519, %v519
      %v536 = vpack.c.b16 %v520, %v520
      %v537 = vpack.c.b16 %v521, %v521
      %v538 = vpack.c.b16 %v522, %v522
      %v539 = vpack.c.b16 %v523, %v523
      %v540 = vpack.c.b16 %v524, %v524
      %v541 = vpack.c.b16 %v525, %v525
      %v542 = vpack.c.b16 %v526, %v526
      %v543 = vpack.c.b16 %v527, %v527
      %560 = vst [vmem:[#allocation9] sm:$0xf] %v528
      %561 = vst [vmem:[#allocation9 + $0x4] sm:$0xf] %v529
      %562 = vst [vmem:[#allocation9 + $0x8] sm:$0xf] %v530
      %563 = vst [vmem:[#allocation9 + $0xc] sm:$0xf] %v531
      %564 = vst [vmem:[#allocation9 + $0x10] sm:$0xf] %v532
      %565 = vst [vmem:[#allocation9 + $0x14] sm:$0xf] %v533
      %566 = vst [vmem:[#allocation9 + $0x18] sm:$0xf] %v534
      %567 = vst [vmem:[#allocation9 + $0x1c] sm:$0xf] %v535
      %568 = vst [vmem:[#allocation9 + $0x20] sm:$0xf] %v536
      %569 = vst [vmem:[#allocation9 + $0x24] sm:$0xf] %v537
      %570 = vst [vmem:[#allocation9 + $0x28] sm:$0xf] %v538
      %571 = vst [vmem:[#allocation9 + $0x2c] sm:$0xf] %v539
      %572 = vst [vmem:[#allocation9 + $0x30] sm:$0xf] %v540
      %573 = vst [vmem:[#allocation9 + $0x34] sm:$0xf] %v541
      %574 = vst [vmem:[#allocation9 + $0x38] sm:$0xf] %v542
      %575 = vst [vmem:[#allocation9 + $0x3c] sm:$0xf] %v543
    $region37: #{tpu_custom_call.1} parent=1 // pred_fallthru
      _
    // Predicated region
    $region38: #{tpu_custom_call.1} parent=1 // pred_check
      _
    $region39: #{tpu_custom_call.1} parent=1 // pred_check_branch
      %577 = sbr.rel (0) target = $region41
    $region40: #{tpu_custom_call.1} parent=1 // pred_region
      %s579 = ssub.s32 1024, 1024
      %580 = vsyncadd [#allocation5], %s579
      %s581 = sshll.u32 [#allocation9], 4
      %s582 = int_to_ptr.vmem [resolvable:$true] %s581
      %587 = dma.vmem_to_hbm [thread:$0]  %s582, 1024, %s4, [#allocation5], 64, 64, 4
    $region41: #{tpu_custom_call.1} parent=1 // pred_fallthru
      _
    // Predicated region
    $region42: #{tpu_custom_call.1} parent=1 // pred_check
      _
    $region43: #{tpu_custom_call.1} parent=1 // pred_check_branch
      %589 = sbr.rel (0) target = $region45
    $region44: #{tpu_custom_call.1} parent=1 // pred_region
      %590 = dma.done [#allocation5], 1024
    $region45: #{tpu_custom_call.1} parent=1 // pred_fallthru
      _
    %591 = vsyncpa [#allocation4], 1
    %592 = vsyncpa [#allocation7], 1
    %593 = vsyncpa [#allocation5], 1

</llo_original>
